<compile_context>
chip_gen: v6e
topology: v6e:2x2x1
jax: 0.10.0
libtpu: 0.0.40
codegen_flags: <defaults>
</compile_context>

<pallas_src>
import functools
import math

import jax
import jax.numpy as jnp
from jax.experimental import pallas as pl
from jax.experimental.pallas import tpu as pltpu


def _round_up(x, m):
    return -(-x // m) * m


def _sinusoidal_kernel(freq_ref, phase_ref, time_ref, out_ref, *,
                       rows_per_packed, fast_cos):
    # freq_ref : (r, packed_dim) f32  block-diagonal: freq_tbl[j, j*dim+k] = scale*freqs[k%half]
    # phase_ref: (1, packed_dim) f32  0.0 on sin lanes, pi/2 on cos lanes
    # time_ref : (TB, r)         f32  r consecutive time steps per packed output row
    # out_ref  : (TB, packed_dim)     lane-dense packed embeddings
    t = time_ref[...]
    f = freq_ref[...]

    # args[i, j*dim + k] = t[i, j] * scale * freqs[k % half]
    # Exact: exactly one nonzero term per output lane (block-diagonal table), the rest
    # contribute exact zeros, so this matches the unpacked reference bit-for-bit.
    args = t[:, 0:1] * f[0:1, :]
    for j in range(1, rows_per_packed):
        args = args + t[:, j:j + 1] * f[j:j + 1, :]

    if fast_cos:
        # One transcendental per lane: sin(x + pi/2) == cos(x) up to ~ulp(arg) rounding.
        emb = jnp.sin(args + phase_ref[...])
    else:
        # Exact dual path (matches the reference construction), ~2x the EUP/VPU work.
        emb = jnp.where(phase_ref[...] > 0.0, jnp.cos(args), jnp.sin(args))

    out_ref[...] = emb.astype(out_ref.dtype)   # single unmasked, full-width store


def sinusoidal_position_embeddings(time, dim, scale=1.0, *,
                                   out_dtype=jnp.float32, block_rows=1024,
                                   fast_cos=True):
    """time: (B,) array -> (B, dim) embeddings (dtype = out_dtype, default float32)."""
    assert dim % 2 == 0, "dim must be even"
    assert time.ndim == 1, "time must be a 1-D vector of timesteps"
    half_dim = dim // 2
    B = time.shape[0]

    # Lane-packing factor: pack r consecutive output rows into one lane-dense row whose
    # width is a multiple of 128 (unmasked full-vreg stores).  Cap r so the in-kernel
    # expansion loop stays short and the packed row stays <= 512 lanes.
    if dim % 128 == 0:
        r = 1
    else:
        l = math.lcm(dim, 128)
        r = l // dim if (l <= 512 and l // dim <= 8) else 1
    packed_dim = r * dim

    # ---- hoisted constants (same expression as the reference, scale folded in) ----
    c = math.log(10000.0) / (half_dim - 1 + 1e-5)
    freqs = jnp.exp(jnp.arange(half_dim, dtype=jnp.float32) * jnp.float32(-c))   # (half,)
    freq_row = jnp.concatenate([freqs, freqs]) * jnp.float32(scale)              # (dim,)
    freq_tbl = jnp.kron(jnp.eye(r, dtype=jnp.float32),
                        freq_row.reshape(1, dim))                                # (r, packed_dim)

    phase_half = jnp.concatenate(
        [jnp.zeros((half_dim,), jnp.float32),
         jnp.full((half_dim,), math.pi / 2, dtype=jnp.float32)])                 # (dim,)
    phase_row = jnp.tile(phase_half, r).reshape(1, packed_dim)                   # (1, packed_dim)

    # ---- batch tiling ----
    # Row tile must respect the output dtype's minimum sublane tile (8 for f32, 16 for bf16).
    itemsize = jnp.dtype(out_dtype).itemsize
    row_mult = {4: 8, 2: 16, 1: 32}.get(itemsize, 8)

    pb = -(-B // r)                                          # packed rows needed
    tb_cap = _round_up(max(int(block_rows), row_mult), row_mult)
    tb_half = _round_up(max(-(-pb // 2), 1), row_mult)       # >= 2 grid steps when possible
    tb = min(tb_cap, tb_half)                                # (lets v7x use both TCs)
    pb_pad = _round_up(pb, tb)
    b_pad = pb_pad * r

    t32 = time.astype(jnp.float32)
    if b_pad != B:
        t32 = jnp.pad(t32, (0, b_pad - B))
    time_packed = t32.reshape(pb_pad, r)

    kernel = functools.partial(_sinusoidal_kernel,
                               rows_per_packed=r, fast_cos=fast_cos)

    out_packed = pl.pallas_call(
        kernel,
        out_shape=jax.ShapeDtypeStruct((pb_pad, packed_dim), out_dtype),
        grid_spec=pltpu.PrefetchScalarGridSpec(
            num_scalar_prefetch=0,
            grid=(pb_pad // tb,),
            in_specs=[
                pl.BlockSpec((r, packed_dim), lambda i: (0, 0)),   # freq table (tiny, resident)
                pl.BlockSpec((1, packed_dim), lambda i: (0, 0)),   # phase row (tiny, resident)
                pl.BlockSpec((tb, r), lambda i: (i, 0)),           # timesteps, tiled over batch
            ],
            out_specs=pl.BlockSpec((tb, packed_dim), lambda i: (i, 0)),
        ),
        compiler_params=pltpu.CompilerParams(
            dimension_semantics=("parallel",),    # shard row blocks across TCs on v7x
        ),
    )(freq_tbl, phase_row, time_packed)

    # Free row-major un-pack: (pb_pad, r*dim) -> (b_pad, dim), then drop padding rows.
    # Callers whose batch is already a multiple of r*tb avoid the pad and the slice entirely.
    out = out_packed.reshape(b_pad, dim)
    if b_pad != B:
        out = out[:B]
    return out


def _reference(time, dim, scale=1.0):
    # Pure-JAX reference mirroring the PyTorch forward.
    half_dim = dim // 2
    c = math.log(10000.0) / (half_dim - 1 + 1e-5)
    freqs = jnp.exp(jnp.arange(half_dim, dtype=jnp.float32) * (-c))
    t = time.astype(jnp.float32) * scale
    args = t[:, None] * freqs[None, :]
    return jnp.concatenate([jnp.sin(args), jnp.cos(args)], axis=-1)


if __name__ == "__main__":
    key = jax.random.PRNGKey(0)
    B, DIM, SCALE = 8, 32, 1.0

    # Deterministic example "time steps" (e.g. diffusion timesteps in [0, 1000)).
    time = jax.random.uniform(key, (B,), dtype=jnp.float32, minval=0.0, maxval=1000.0)
    ref = _reference(time, DIM, SCALE)

    # Fast path (default): cos lanes computed as sin(x + pi/2) — one transcendental/lane.
    out = jax.block_until_ready(sinusoidal_position_embeddings(time, DIM, SCALE))
    assert out.shape == (B, DIM)
    assert out.dtype == jnp.float32
    assert jnp.allclose(out, ref, atol=2e-3, rtol=0.0), "fast path mismatch vs reference"

    # Exact path: identical argument construction and true cos on cos lanes.
    out_exact = jax.block_until_ready(
        sinusoidal_position_embeddings(time, DIM, SCALE, fast_cos=False))
    assert jnp.allclose(out_exact, ref, atol=1e-4, rtol=1e-4), "exact path mismatch"

    # Exercise the padding path (B not a multiple of the lane-packing factor).
    time2 = jax.random.uniform(jax.random.PRNGKey(1), (5,), dtype=jnp.float32,
                               minval=0.0, maxval=1000.0)
    out2 = jax.block_until_ready(sinusoidal_position_embeddings(time2, DIM, SCALE))
    assert out2.shape == (5, DIM)
    assert jnp.allclose(out2, _reference(time2, DIM, SCALE), atol=2e-3, rtol=0.0)

    print("KERNEL_OK")
</pallas_src>

<mosaic_0001>
module attributes {stable_mosaic.version = 11 : i64} {
  func.func @_sinusoidal_kernel(%arg0: i32, %arg1: memref<4x128xf32, #tpu.memory_space<vmem>>, %arg2: memref<1x128xf32, #tpu.memory_space<vmem>>, %arg3: memref<8x4xf32, #tpu.memory_space<vmem>>, %arg4: memref<8x128xf32, #tpu.memory_space<vmem>>) attributes {dimension_semantics = [#tpu.dimension_semantics<parallel>], iteration_bounds = array<i64: 1>, scalar_prefetch = 0 : i64, scratch_operands = 0 : i64, tpu.core_type = #tpu.core_type<tc>, window_params = [{pipeline_mode = #tpu.pipeline_mode<synchronous>, transform_indices = @transform_0, window_bounds = array<i64: 4, 128>}, {pipeline_mode = #tpu.pipeline_mode<synchronous>, transform_indices = @transform_1, window_bounds = array<i64: 1, 128>}, {transform_indices = @transform_2, window_bounds = array<i64: 8, 4>}, {transform_indices = @transform_3, window_bounds = array<i64: 8, 128>}]} {
    %c0 = arith.constant 0 : index
    %c0_0 = arith.constant 0 : index
    %0 = vector.load %arg3[%c0, %c0_0] : memref<8x4xf32, #tpu.memory_space<vmem>>, vector<8x4xf32>
    %c0_1 = arith.constant 0 : index
    %c0_2 = arith.constant 0 : index
    %1 = vector.load %arg1[%c0_1, %c0_2] : memref<4x128xf32, #tpu.memory_space<vmem>>, vector<4x128xf32>
    %2 = vector.extract_strided_slice %0 {offsets = [0, 0], sizes = [8, 1], strides = [1, 1]} : vector<8x4xf32> to vector<8x1xf32>
    %3 = vector.extract_strided_slice %1 {offsets = [0, 0], sizes = [1, 128], strides = [1, 1]} : vector<4x128xf32> to vector<1x128xf32>
    %4 = vector.broadcast %2 : vector<8x1xf32> to vector<8x128xf32>
    %5 = vector.broadcast %3 : vector<1x128xf32> to vector<8x128xf32>
    %6 = arith.mulf %4, %5 : vector<8x128xf32>
    %7 = vector.extract_strided_slice %0 {offsets = [0, 1], sizes = [8, 1], strides = [1, 1]} : vector<8x4xf32> to vector<8x1xf32>
    %8 = vector.extract_strided_slice %1 {offsets = [1, 0], sizes = [1, 128], strides = [1, 1]} : vector<4x128xf32> to vector<1x128xf32>
    %9 = vector.broadcast %7 : vector<8x1xf32> to vector<8x128xf32>
    %10 = vector.broadcast %8 : vector<1x128xf32> to vector<8x128xf32>
    %11 = arith.mulf %9, %10 : vector<8x128xf32>
    %12 = arith.addf %6, %11 : vector<8x128xf32>
    %13 = vector.extract_strided_slice %0 {offsets = [0, 2], sizes = [8, 1], strides = [1, 1]} : vector<8x4xf32> to vector<8x1xf32>
    %14 = vector.extract_strided_slice %1 {offsets = [2, 0], sizes = [1, 128], strides = [1, 1]} : vector<4x128xf32> to vector<1x128xf32>
    %15 = vector.broadcast %13 : vector<8x1xf32> to vector<8x128xf32>
    %16 = vector.broadcast %14 : vector<1x128xf32> to vector<8x128xf32>
    %17 = arith.mulf %15, %16 : vector<8x128xf32>
    %18 = arith.addf %12, %17 : vector<8x128xf32>
    %19 = vector.extract_strided_slice %0 {offsets = [0, 3], sizes = [8, 1], strides = [1, 1]} : vector<8x4xf32> to vector<8x1xf32>
    %20 = vector.extract_strided_slice %1 {offsets = [3, 0], sizes = [1, 128], strides = [1, 1]} : vector<4x128xf32> to vector<1x128xf32>
    %21 = vector.broadcast %19 : vector<8x1xf32> to vector<8x128xf32>
    %22 = vector.broadcast %20 : vector<1x128xf32> to vector<8x128xf32>
    %23 = arith.mulf %21, %22 : vector<8x128xf32>
    %24 = arith.addf %18, %23 : vector<8x128xf32>
    %c0_3 = arith.constant 0 : index
    %c0_4 = arith.constant 0 : index
    %25 = vector.load %arg2[%c0_3, %c0_4] : memref<1x128xf32, #tpu.memory_space<vmem>>, vector<1x128xf32>
    %26 = vector.broadcast %25 : vector<1x128xf32> to vector<8x128xf32>
    %27 = arith.addf %24, %26 : vector<8x128xf32>
    %28 = math.sin %27 : vector<8x128xf32>
    %c0_5 = arith.constant 0 : index
    %c0_6 = arith.constant 0 : index
    %29 = vector.load %arg4[%c0_5, %c0_6] : memref<8x128xf32, #tpu.memory_space<vmem>>, vector<8x128xf32>
    tpu.vector_store %arg4[%c0_5, %c0_6], %28 {strides = array<i32>} : memref<8x128xf32, #tpu.memory_space<vmem>>, vector<8x128xf32>,
    return
  }
  func.func @transform_0(%arg0: i32) -> (i32, i32) {
    %c0_i32 = arith.constant 0 : i32
    %c0_i32_0 = arith.constant 0 : i32
    %c0_i32_1 = arith.constant 0 : i32
    return %c0_i32, %c0_i32_0 : i32, i32
  }
  func.func @transform_1(%arg0: i32) -> (i32, i32) {
    %c0_i32 = arith.constant 0 : i32
    %c0_i32_0 = arith.constant 0 : i32
    %c0_i32_1 = arith.constant 0 : i32
    return %c0_i32, %c0_i32_0 : i32, i32
  }
  func.func @transform_2(%arg0: i32) -> (i32, i32) {
    %c0_i32 = arith.constant 0 : i32
    %c0_i32_0 = arith.constant 0 : i32
    return %arg0, %c0_i32 : i32, i32
  }
  func.func @transform_3(%arg0: i32) -> (i32, i32) {
    %c0_i32 = arith.constant 0 : i32
    %c0_i32_0 = arith.constant 0 : i32
    return %arg0, %c0_i32 : i32, i32
  }
}

</mosaic_0001>

<llo_original>
// kernel: tpu_custom_call.1
$region0: #{tpu_custom_call.1}
  #allocation0 [shape = 'u32[]', space=smem, size = 0x4, offset = 0x4, fixed_abs, tag = 'smem constant byte address 0x4 - core index']
  #allocation1 [shape = 'u32[144,128]{1,0:T(1,128)}', space=vmem, size = 0x12000, scoped, tag = 'internal scratch']
  %s0 = inlined_call_operand.vmem [shape: f32[4,128], index: 0, kind: input, shape index: {}]
  %s1 = inlined_call_operand.vmem [shape: f32[1,128], index: 1, kind: input, shape index: {}]
  %s2 = inlined_call_operand.vmem [shape: f32[8,4], index: 2, kind: input, shape index: {}]
  %s3 = inlined_call_operand.hbm [shape: f32[8,128], index: 3, kind: output, shape index: {}]
  %s4 = sld [smem:[#allocation0]]
  $region22: #{tpu_custom_call.1} parent=0
    _
  %s6 = ssub.s32 1, %s4
  %s7 = scalar_select 0, %s6, %s4
  $region1: #{tpu_custom_call.1} parent=0
    #allocation2 [shape = 'u8[4096]{0}', space=vmem, size = 0x1000, scoped, tag = 'output window, operand 0, single buffered']
    #allocation3 [shape = 's32[1]{0}', space=sflag, size = 0x4, scoped, tag = 'scoped memory for tpu_custom_call.1']
    %8 = vsyncpa [#allocation3], 0
    // Predicated region
    $region2: #{tpu_custom_call.1} parent=1 // pred_check
      _
    $region3: #{tpu_custom_call.1} parent=1 // pred_check_branch
      %10 = sbr.rel (0) target = $region5
    $region4: #{tpu_custom_call.1} parent=1 // pred_region
      _
    $region5: #{tpu_custom_call.1} parent=1 // pred_fallthru
      _
    // Predicated region
    $region6: #{tpu_custom_call.1} parent=1 // pred_check
      _
    $region7: #{tpu_custom_call.1} parent=1 // pred_check_branch
      %12 = sbr.rel (0) target = $region9
    $region8: #{tpu_custom_call.1} parent=1 // pred_region
      _
    $region9: #{tpu_custom_call.1} parent=1 // pred_fallthru
      _
    // Predicated region
    $region10: #{tpu_custom_call.1} parent=1 // pred_check
      _
    $region11: #{tpu_custom_call.1} parent=1 // pred_check_branch
      %14 = sbr.rel (0) target = $region13
    $region12: #{tpu_custom_call.1} parent=1 // pred_region
      _
    $region13: #{tpu_custom_call.1} parent=1 // pred_fallthru
      _
    %v15 = vld [vmem:[%s2] sm:$0xff]
    %v16 = vld [vmem:[%s0] sm:$0xf]
    %18 = vset.pattern.permute.xlu0 0
    %19 = vperm.xlu0 %18, %v15
    %v20 = vpop.permute.xlu0 %19
    %v22 = vlaneseq
    %v23 = vshrl.u32 %v22, 7
    %v24 = vsub.s32 0, %v23
    %v25 = vrot.slane %v16, %v24
    %v26 = vmul.f32 %v20, %v25
    %27 = vset.pattern.permute.xlu0 1
    %28 = vperm.xlu0 %27, %v15
    %v29 = vpop.permute.xlu0 %28
    %v31 = vlaneseq
    %v32 = vshrl.u32 %v31, 7
    %v33 = vsub.s32 1, %v32
    %v34 = vrot.slane %v16, %v33
    %v35 = vmul.f32 %v29, %v34
    %v36 = vadd.f32 %v26, %v35
    %37 = vset.pattern.permute.xlu0 2
    %38 = vperm.xlu0 %37, %v15
    %v39 = vpop.permute.xlu0 %38
    %v41 = vlaneseq
    %v42 = vshrl.u32 %v41, 7
    %v43 = vsub.s32 2, %v42
    %v44 = vrot.slane %v16, %v43
    %v45 = vmul.f32 %v39, %v44
    %v46 = vadd.f32 %v36, %v45
    %47 = vset.pattern.permute.xlu0 3
    %48 = vperm.xlu0 %47, %v15
    %v49 = vpop.permute.xlu0 %48
    %v51 = vlaneseq
    %v52 = vshrl.u32 %v51, 7
    %v53 = vsub.s32 3, %v52
    %v54 = vrot.slane %v16, %v53
    %v55 = vmul.f32 %v49, %v54
    %v56 = vadd.f32 %v46, %v55
    %v57 = vld [vmem:[%s1] sm:$0x1]
    %v59 = vlaneseq
    %v60 = vshrl.u32 %v59, 7
    %v61 = vsub.s32 0, %v60
    %v62 = vrot.slane %v57, %v61
    %v64 = vadd.f32 %v56, %v62
    %v65 = vand.u32 2147483647, %v64
    %vm66 = vcmp.le.f32.partialorder %v65, 0.7853982
    %vm67 = vcmp.lt.s32.totalorder %v64, 0
    %v68 = vand.u32 %v64, 2139095040
    %v69 = vshrl.u32 %v68, 23
    %v70 = vsub.s32 %v69, 127
    %v71 = vand.u32 2147483647, %v64
    %v72 = vand.u32 %v71, 8388607
    %v73 = vor.u32 %v72, 8388608
    %v74 = vsub.s32 0, %v73
    %v75 = vadd.s32 %v70, 1
    %vm76 = vcmp.gt.s32.totalorder %v75, 0
    %v77 = vsel %vm76, %v75, 0
    %v78 = vshrl.u32 %v77, 5
    %v79 = vand.u32 %v77, 31
    %v80 = vsub.s32 32, %v79
    %v81 = vshrl.u32 683565275, %v80
    %v82 = vshll.u32 683565275, %v79
    %v83 = vshrl.u32 2475754826, %v80
    %v84 = vor.u32 %v82, %v83
    %v85 = vshll.u32 2475754826, %v79
    %v86 = vshrl.u32 2131351028, %v80
    %v87 = vor.u32 %v85, %v86
    %v88 = vshll.u32 2131351028, %v79
    %v89 = vshrl.u32 2102212464, %v80
    %v90 = vor.u32 %v88, %v89
    %v91 = vshll.u32 2102212464, %v79
    %v92 = vshrl.u32 920167782, %v80
    %v93 = vor.u32 %v91, %v92
    %v94 = vshll.u32 920167782, %v79
    %v95 = vshrl.u32 1326507024, %v80
    %v96 = vor.u32 %v94, %v95
    %vm97 = vcmp.lt.s32.totalorder %v78, 1
    %vm98 = vcmp.lt.s32.totalorder %v78, 2
    %vm99 = vcmp.lt.s32.totalorder %v78, 3
    %vm100 = vcmp.lt.s32.totalorder %v78, 4
    %v101 = vsel %vm97, %v81, %v84
    %v102 = vsel %vm100, %v90, 2102212464
    %v103 = vsel %vm99, %v87, %v102
    %v104 = vsel %vm98, %v101, %v103
    %v105 = vsel %vm97, %v84, %v87
    %v106 = vsel %vm100, %v93, 920167782
    %v107 = vsel %vm99, %v90, %v106
    %v108 = vsel %vm98, %v105, %v107
    %v109 = vsel %vm97, %v87, %v90
    %v110 = vsel %vm100, %v96, 1326507024
    %v111 = vsel %vm99, %v93, %v110
    %v112 = vsel %vm98, %v109, %v111
    %v113 = vshll.u32 %v73, 8
    %v114 = vmul.u32.u64.compose %v113, %v112
    %v115 = vextract.low.u32 %v114
    %v116 = vextract.high.u32 %v114
    %v117 = vmul.u32.u64.compose %v113, %v108
    %v118 = vextract.low.u32 %v117
    %v119 = vextract.high.u32 %v117
    %v120 = vmul.u32 %v113, %v104
    %v121 = vadd.s32 %v116, %v118
    %vm122 = vc.u32 %v116, %v118
    %v123 = vadd.s32 %v119, 1
    %v124 = vsel %vm122, %v123, %v119
    %v125 = vadd.s32 %v120, %v124
    %v126 = vadd.s32 %v125, 536870912
    %v127 = vshrl.u32 %v126, 30
    %v128 = vshll.u32 %v127, 30
    %v129 = vsub.s32 %v125, %v128
    %vm130 = vcmp.lt.s32.totalorder %v129, 0
    %v131 = vsub.s32 0, %v129
    %v132 = vsel %vm130, %v131, %v129
    %v133 = vclz %v132
    %v134 = vsub.s32 %v133, 2
    %vm135 = vcmp.gt.s32.totalorder 0, %v134
    %v136 = vsel %vm135, 0, %v134
    %v137 = vsub.s32 32, %v136
    %v138 = vshll.u32 %v129, %v136
    %v139 = vshrl.u32 %v121, %v137
    %v140 = vor.u32 %v138, %v139
    %v141 = vsub.s32 4294967266, %v136
    %v142 = vadd.s32 %v141, 127
    %v143 = vshll.u32 %v142, 23
    %v144 = vor.u32 4788187, %v143
    %v145 = vand.u32 2147483647, %v144
    %v147 = vcvt.s32.f32 %v140
    %v148 = vmul.f32 %v147, %v145
    %v149 = vxor.u32 %v148, 2147483648
    %v150 = vsel %vm67, %v149, %v148
    %v151 = vsub.s32 4, %v127
    %v152 = vsel %vm67, %v151, %v127
    %v153 = vsel %vm66, %v64, %v150
    %v154 = vsel %vm66, 0, %v152
    %v155 = vcosq.f32.pop %v153
    %v156 = vsinq.f32.pop %v153
    %vm157 = vweird.f32 %v64
    %v158 = vadd.s32 %v154, 3
    %v159 = vand.u32 %v158, 3
    %vm160 = vcmp.lt.s32.totalorder %v159, 2
    %vm161 = vcmp.eq.s32.totalorder %v159, 0
    %v162 = vxor.u32 %v156, 2147483648
    %v163 = vsel %vm161, %v155, %v162
    %vm164 = vcmp.eq.s32.totalorder %v159, 2
    %v165 = vxor.u32 %v155, 2147483648
    %v166 = vsel %vm164, %v165, %v156
    %v167 = vsel %vm160, %v163, %v166
    %v168 = vsel %vm157, nan, %v167
    %169 = vst [vmem:[#allocation2] sm:$0xff] %v168
    // Predicated region
    $region14: #{tpu_custom_call.1} parent=1 // pred_check
      _
    $region15: #{tpu_custom_call.1} parent=1 // pred_check_branch
      %171 = sbr.rel (0) target = $region17
    $region16: #{tpu_custom_call.1} parent=1 // pred_region
      %s173 = ssub.s32 128, 128
      %174 = vsyncadd [#allocation3], %s173
      %s176 = sshll.u32 [#allocation2], 4
      %s177 = int_to_ptr.vmem [resolvable:$true] %s176
      %179 = dma.vmem_to_hbm [thread:$0]  %s177, 128, %s3, [#allocation3]
    $region17: #{tpu_custom_call.1} parent=1 // pred_fallthru
      _
    // Predicated region
    $region18: #{tpu_custom_call.1} parent=1 // pred_check
      _
    $region19: #{tpu_custom_call.1} parent=1 // pred_check_branch
      %181 = sbr.rel (0) target = $region21
    $region20: #{tpu_custom_call.1} parent=1 // pred_region
      %182 = dma.done [#allocation3], 128
    $region21: #{tpu_custom_call.1} parent=1 // pred_fallthru
      _
    %183 = vsyncpa [#allocation3], 1

</llo_original>
